<compile_context>
chip_gen: v6e
topology: v6e:2x2x1
jax: 0.10.0
libtpu: 0.0.40
codegen_flags: <defaults>
</compile_context>

<pallas_src>
import math

import jax
import jax.numpy as jnp
from jax.experimental import pallas as pl
from jax.experimental.pallas import tpu as pltpu


# --------------------------------------------------------------------------
# Pallas kernel: whole problem resident in VMEM, K2 AR steps fused.
# --------------------------------------------------------------------------
def _ar_fft_kernel(x_ref, p_ref, q_ref, bdw_ref, bdgw_ref, fgh_ref, o_ref):
    H, BW = x_ref.shape               # (H, N*C*W)
    K2 = p_ref.shape[0]
    f32 = jnp.float32

    FH_cat = fgh_ref[0:2 * H, :]      # (2H, H)  = [FHr; FHi]
    GH_cat = fgh_ref[2 * H:4 * H, :]  # (2H, H)  = [GHr; GHi]
    BDW = bdw_ref[...]                # (BW, 2BW) = [blkdiag(FWr) | blkdiag(FWi)]
    BDGW = bdgw_ref[...]              # (2BW, 2BW) block-complex inverse-W matrix

    x = x_ref[...].astype(f32)

    for k in range(K2):               # static, tiny trip count (kernel_size // 2)
        P = p_ref[k]                  # (H, BW) = Ar / |A|^2  (per-lane channel)
        Q = q_ref[k]                  # (H, BW) = Ai / |A|^2
        # Forward W-DFT (right-multiply, batched via block-diagonal): [Tr | Ti]
        T = jnp.dot(x, BDW, preferred_element_type=f32)          # (H, 2BW)
        # Forward H-DFT (left-multiply, real & imag rows fused)
        R = jnp.dot(FH_cat, T, preferred_element_type=f32)       # (2H, 2BW)
        Xr = R[:H, :BW] - R[H:, BW:]
        Xi = R[H:, :BW] + R[:H, BW:]
        # Complex division X / A  (matches complex_division(..., trans_deno=False))
        Yr = Xr * P + Xi * Q
        Yi = Xi * P - Xr * Q
        # Inverse W-DFT (right-multiply, block-complex): [Ur | Ui]
        Y = jnp.concatenate([Yr, Yi], axis=1)                    # (H, 2BW)
        U = jnp.dot(Y, BDGW, preferred_element_type=f32)         # (H, 2BW)
        # Inverse H-DFT, keep only the real part: y = GHr@Ur - GHi@Ui
        V = jnp.dot(GH_cat, U, preferred_element_type=f32)       # (2H, 2BW)
        x = V[:H, :BW] - V[H:, BW:]

    o_ref[...] = x.astype(o_ref.dtype)


def _ar_solve_pallas(x2d, P, Q, BDW, BDGW, FGH):
    """x2d: (H, B*W) lane-dense slab; P/Q: (K2, H, B*W); matrices precomputed."""
    H, BW = x2d.shape
    K2 = P.shape[0]
    return pl.pallas_call(
        _ar_fft_kernel,
        out_shape=jax.ShapeDtypeStruct((H, BW), x2d.dtype),
        grid=(1,),
        in_specs=[
            pl.BlockSpec((H, BW), lambda i: (0, 0)),             # x slab
            pl.BlockSpec((K2, H, BW), lambda i: (0, 0, 0)),      # Ar/|A|^2
            pl.BlockSpec((K2, H, BW), lambda i: (0, 0, 0)),      # Ai/|A|^2
            pl.BlockSpec(BDW.shape, lambda i: (0, 0)),           # forward W matrix
            pl.BlockSpec(BDGW.shape, lambda i: (0, 0)),          # inverse W matrix
            pl.BlockSpec(FGH.shape, lambda i: (0, 0)),           # H-side DFT stack
        ],
        out_specs=pl.BlockSpec((H, BW), lambda i: (0, 0)),
        compiler_params=pltpu.CompilerParams(
            dimension_semantics=("arbitrary",),
            vmem_limit_bytes=64 * 1024 * 1024),
    )(x2d, P, Q, BDW, BDGW, FGH)


# --------------------------------------------------------------------------
# Glue: parameter -> spatial AR filter -> frequency-domain coefficients,
# block-real DFT matrices, lane-dense packing.
# --------------------------------------------------------------------------
def _build_spatial_filter(alpha, H, W):
    """alpha: (C, K2, 4) -> a: (C, K2, H, W), exactly as autoregressive_circular."""
    alpha = jnp.tanh(alpha) / math.sqrt(2.0)
    c0 = alpha[..., 0]; c1 = alpha[..., 1]; c2 = alpha[..., 2]; c3 = alpha[..., 3]
    cosv = math.cos(-math.pi / 4.0)
    sinv = math.sin(-math.pi / 4.0)
    A_x_left = c0 * cosv - c1 * sinv
    A_x_right = c0 * sinv + c1 * cosv
    A_y_left = c2 * cosv - c3 * sinv
    A_y_right = c2 * sinv + c3 * cosv
    ones = jnp.ones_like(c0)
    A_x = jnp.concatenate(
        [ones[..., None], A_x_right[..., None],
         jnp.zeros(c0.shape + (H - 3,), alpha.dtype), A_x_left[..., None]], axis=-1)
    A_y = jnp.concatenate(
        [ones[..., None], A_y_right[..., None],
         jnp.zeros(c2.shape + (W - 3,), alpha.dtype), A_y_left[..., None]], axis=-1)
    return jnp.einsum('tzi,tzj->tzij', A_x, A_y)          # (C, K2, H, W)


def _dft_matrices(n):
    k = jnp.arange(n, dtype=jnp.float32)
    ang = -2.0 * math.pi * jnp.outer(k, k) / n
    Fr = jnp.cos(ang).astype(jnp.float32)
    Fi = jnp.sin(ang).astype(jnp.float32)
    Gr = (Fr / n).astype(jnp.float32)                     # conj(F)/n : inverse DFT
    Gi = (-Fi / n).astype(jnp.float32)
    return Fr, Fi, Gr, Gi


def autoregressive2d_forward(x, alpha):
    """Forward pass of AutoRegressive2d (padding_mode='circular')."""
    N, C, H, W = x.shape
    K2 = alpha.shape[1]
    if H < 2 * K2 + 1 or W < 2 * K2 + 1:
        return x
    B = N * C

    # Frequency-domain AR coefficients, pre-divided by |A|^2 (no in-kernel divide).
    a = _build_spatial_filter(alpha, H, W)                # (C, K2, H, W)
    A_hat = jnp.fft.fft2(a)                               # tiny setup FFT (wrapper glue)
    Ar = jnp.real(A_hat).astype(jnp.float32)
    Ai = jnp.imag(A_hat).astype(jnp.float32)
    inv_den = 1.0 / (Ar * Ar + Ai * Ai)
    Pc = Ar * inv_den
    Qc = Ai * inv_den

    # (C, K2, H, W) -> lane layout (K2, H, N*C*W), lane index = (n*C + c)*W + w
    def to_lanes(t):
        t = jnp.transpose(t, (1, 2, 0, 3))                # (K2, H, C, W)
        t = jnp.broadcast_to(t[:, :, None, :, :], (K2, H, N, C, W))
        return t.reshape(K2, H, B * W)

    P_l = to_lanes(Pc)
    Q_l = to_lanes(Qc)

    # Block-real DFT matrices (precomputed once, concatenated to few inputs).
    FHr, FHi, GHr, GHi = _dft_matrices(H)
    FWr, FWi, GWr, GWi = _dft_matrices(W)
    eyeB = jnp.eye(B, dtype=jnp.float32)
    BDW = jnp.concatenate(
        [jnp.kron(eyeB, FWr), jnp.kron(eyeB, FWi)], axis=1)        # (BW, 2BW)
    BDGWr = jnp.kron(eyeB, GWr)
    BDGWi = jnp.kron(eyeB, GWi)
    BDGW = jnp.concatenate(
        [jnp.concatenate([BDGWr, BDGWi], axis=1),
         jnp.concatenate([-BDGWi, BDGWr], axis=1)], axis=0)        # (2BW, 2BW)
    FGH = jnp.concatenate([FHr, FHi, GHr, GHi], axis=0)            # (4H, H)

    # x: (N, C, H, W) -> lane-dense slab (H, N*C*W); inverse at the end.
    x2d = jnp.transpose(x, (2, 0, 1, 3)).reshape(H, B * W)
    y2d = _ar_solve_pallas(x2d, P_l, Q_l, BDW, BDGW, FGH)
    y = jnp.transpose(y2d.reshape(H, N, C, W), (1, 2, 0, 3))
    return y.astype(x.dtype)


# --------------------------------------------------------------------------
# Pure-JAX reference (jnp.fft) for correctness checking
# --------------------------------------------------------------------------
def _reference_forward(x, alpha):
    N, C, H, W = x.shape
    K2 = alpha.shape[1]
    if H < 2 * K2 + 1 or W < 2 * K2 + 1:
        return x
    a = _build_spatial_filter(alpha, H, W)
    for i in range(K2):
        X = jnp.fft.fft2(x)
        A = jnp.fft.fft2(a[:, i])
        x = jnp.real(jnp.fft.ifft2(X / A[None])).astype(x.dtype)
    return x


if __name__ == "__main__":
    key = jax.random.PRNGKey(0)
    kx, ka = jax.random.split(key)

    N, C, H, W = 2, 4, 16, 16
    kernel_size = 3                                       # -> alpha shape (C, 1, 4)
    x = jax.random.normal(kx, (N, C, H, W), dtype=jnp.float32)
    # Deterministic non-trivial parameter init (module's zeros_ init would make
    # the layer an exact identity); small scale keeps the AR filter invertible.
    alpha = 0.3 * jax.random.normal(ka, (C, kernel_size // 2, 4), dtype=jnp.float32)

    y = autoregressive2d_forward(x, alpha)
    y = jax.block_until_ready(y)

    y_ref = jax.block_until_ready(_reference_forward(x, alpha))
    assert y.shape == x.shape and y.dtype == x.dtype
    assert jnp.allclose(y, y_ref, atol=1e-3, rtol=1e-3), "mismatch vs jnp.fft reference"

    print("KERNEL_OK")
</pallas_src>

<mosaic_0001>
module attributes {stable_mosaic.version = 11 : i64} {
  func.func @_ar_fft_kernel(%arg0: i32, %arg1: memref<16x128xf32, #tpu.memory_space<vmem>>, %arg2: memref<1x16x128xf32, #tpu.memory_space<vmem>>, %arg3: memref<1x16x128xf32, #tpu.memory_space<vmem>>, %arg4: memref<128x256xf32, #tpu.memory_space<vmem>>, %arg5: memref<256x256xf32, #tpu.memory_space<vmem>>, %arg6: memref<64x16xf32, #tpu.memory_space<vmem>>, %arg7: memref<16x128xf32, #tpu.memory_space<vmem>>) attributes {dimension_semantics = [#tpu.dimension_semantics<arbitrary>], iteration_bounds = array<i64: 1>, scalar_prefetch = 0 : i64, scratch_operands = 0 : i64, tpu.core_type = #tpu.core_type<tc>, window_params = [{pipeline_mode = #tpu.pipeline_mode<synchronous>, transform_indices = @transform_0, window_bounds = array<i64: 16, 128>}, {pipeline_mode = #tpu.pipeline_mode<synchronous>, transform_indices = @transform_1, window_bounds = array<i64: 1, 16, 128>}, {pipeline_mode = #tpu.pipeline_mode<synchronous>, transform_indices = @transform_2, window_bounds = array<i64: 1, 16, 128>}, {pipeline_mode = #tpu.pipeline_mode<synchronous>, transform_indices = @transform_3, window_bounds = array<i64: 128, 256>}, {pipeline_mode = #tpu.pipeline_mode<synchronous>, transform_indices = @transform_4, window_bounds = array<i64: 256, 256>}, {pipeline_mode = #tpu.pipeline_mode<synchronous>, transform_indices = @transform_5, window_bounds = array<i64: 64, 16>}, {pipeline_mode = #tpu.pipeline_mode<synchronous>, transform_indices = @transform_6, window_bounds = array<i64: 16, 128>}]} {
    %c0 = arith.constant 0 : index
    %c0_0 = arith.constant 0 : index
    %0 = vector.load %arg6[%c0, %c0_0] : memref<64x16xf32, #tpu.memory_space<vmem>>, vector<32x16xf32>
    %c32 = arith.constant 32 : index
    %c0_1 = arith.constant 0 : index
    %1 = vector.load %arg6[%c32, %c0_1] : memref<64x16xf32, #tpu.memory_space<vmem>>, vector<32x16xf32>
    %c0_2 = arith.constant 0 : index
    %c0_3 = arith.constant 0 : index
    %2 = vector.load %arg4[%c0_2, %c0_3] : memref<128x256xf32, #tpu.memory_space<vmem>>, vector<128x256xf32>
    %c0_4 = arith.constant 0 : index
    %c0_5 = arith.constant 0 : index
    %3 = vector.load %arg5[%c0_4, %c0_5] : memref<256x256xf32, #tpu.memory_space<vmem>>, vector<256x256xf32>
    %c0_6 = arith.constant 0 : index
    %c0_7 = arith.constant 0 : index
    %4 = vector.load %arg1[%c0_6, %c0_7] : memref<16x128xf32, #tpu.memory_space<vmem>>, vector<16x128xf32>
    %c0_8 = arith.constant 0 : index
    %c0_9 = arith.constant 0 : index
    %c0_10 = arith.constant 0 : index
    %5 = vector.load %arg2[%c0_8, %c0_9, %c0_10] : memref<1x16x128xf32, #tpu.memory_space<vmem>>, vector<1x16x128xf32>
    %6 = vector.shape_cast %5 : vector<1x16x128xf32> to vector<16x128xf32>
    %c0_11 = arith.constant 0 : index
    %c0_12 = arith.constant 0 : index
    %c0_13 = arith.constant 0 : index
    %7 = vector.load %arg3[%c0_11, %c0_12, %c0_13] : memref<1x16x128xf32, #tpu.memory_space<vmem>>, vector<1x16x128xf32>
    %8 = vector.shape_cast %7 : vector<1x16x128xf32> to vector<16x128xf32>
    %cst = arith.constant dense<0.000000e+00> : vector<16x256xf32>
    %9 = tpu.matmul %4, %2, %cst {dimension_numbers = #tpu.dot_dimension_numbers<[1], [0], [0], [1], [0, 0, 1, 1], [], []>} : vector<16x128xf32>, vector<128x256xf32>, vector<16x256xf32> -> vector<16x256xf32>
    %cst_14 = arith.constant dense<0.000000e+00> : vector<32x256xf32>
    %10 = tpu.matmul %0, %9, %cst_14 {dimension_numbers = #tpu.dot_dimension_numbers<[1], [0], [0], [1], [0, 0, 1, 1], [], []>} : vector<32x16xf32>, vector<16x256xf32>, vector<32x256xf32> -> vector<32x256xf32>
    %11 = vector.extract_strided_slice %10 {offsets = [0, 0], sizes = [16, 128], strides = [1, 1]} : vector<32x256xf32> to vector<16x128xf32>
    %12 = vector.extract_strided_slice %10 {offsets = [16, 128], sizes = [16, 128], strides = [1, 1]} : vector<32x256xf32> to vector<16x128xf32>
    %13 = arith.subf %11, %12 : vector<16x128xf32>
    %14 = vector.extract_strided_slice %10 {offsets = [16, 0], sizes = [16, 128], strides = [1, 1]} : vector<32x256xf32> to vector<16x128xf32>
    %15 = vector.extract_strided_slice %10 {offsets = [0, 128], sizes = [16, 128], strides = [1, 1]} : vector<32x256xf32> to vector<16x128xf32>
    %16 = arith.addf %14, %15 : vector<16x128xf32>
    %17 = arith.mulf %13, %6 : vector<16x128xf32>
    %18 = arith.mulf %16, %8 : vector<16x128xf32>
    %19 = arith.addf %17, %18 : vector<16x128xf32>
    %20 = arith.mulf %16, %6 : vector<16x128xf32>
    %21 = arith.mulf %13, %8 : vector<16x128xf32>
    %22 = arith.subf %20, %21 : vector<16x128xf32>
    %23 = tpu.concatenate %19, %22 in 1 : vector<16x128xf32>, vector<16x128xf32> -> vector<16x256xf32>
    %cst_15 = arith.constant dense<0.000000e+00> : vector<16x256xf32>
    %24 = tpu.matmul %23, %3, %cst_15 {dimension_numbers = #tpu.dot_dimension_numbers<[1], [0], [0], [1], [0, 0, 1, 1], [], []>} : vector<16x256xf32>, vector<256x256xf32>, vector<16x256xf32> -> vector<16x256xf32>
    %cst_16 = arith.constant dense<0.000000e+00> : vector<32x256xf32>
    %25 = tpu.matmul %1, %24, %cst_16 {dimension_numbers = #tpu.dot_dimension_numbers<[1], [0], [0], [1], [0, 0, 1, 1], [], []>} : vector<32x16xf32>, vector<16x256xf32>, vector<32x256xf32> -> vector<32x256xf32>
    %26 = vector.extract_strided_slice %25 {offsets = [0, 0], sizes = [16, 128], strides = [1, 1]} : vector<32x256xf32> to vector<16x128xf32>
    %27 = vector.extract_strided_slice %25 {offsets = [16, 128], sizes = [16, 128], strides = [1, 1]} : vector<32x256xf32> to vector<16x128xf32>
    %28 = arith.subf %26, %27 : vector<16x128xf32>
    %c0_17 = arith.constant 0 : index
    %c0_18 = arith.constant 0 : index
    %29 = vector.load %arg7[%c0_17, %c0_18] : memref<16x128xf32, #tpu.memory_space<vmem>>, vector<16x128xf32>
    tpu.vector_store %arg7[%c0_17, %c0_18], %28 {strides = array<i32>} : memref<16x128xf32, #tpu.memory_space<vmem>>, vector<16x128xf32>,
    return
  }
  func.func @transform_0(%arg0: i32) -> (i32, i32) {
    %c0_i32 = arith.constant 0 : i32
    %c0_i32_0 = arith.constant 0 : i32
    %c0_i32_1 = arith.constant 0 : i32
    return %c0_i32, %c0_i32_0 : i32, i32
  }
  func.func @transform_1(%arg0: i32) -> (i32, i32, i32) {
    %c0_i32 = arith.constant 0 : i32
    %c0_i32_0 = arith.constant 0 : i32
    %c0_i32_1 = arith.constant 0 : i32
    %c0_i32_2 = arith.constant 0 : i32
    return %c0_i32, %c0_i32_0, %c0_i32_1 : i32, i32, i32
  }
  func.func @transform_2(%arg0: i32) -> (i32, i32, i32) {
    %c0_i32 = arith.constant 0 : i32
    %c0_i32_0 = arith.constant 0 : i32
    %c0_i32_1 = arith.constant 0 : i32
    %c0_i32_2 = arith.constant 0 : i32
    return %c0_i32, %c0_i32_0, %c0_i32_1 : i32, i32, i32
  }
  func.func @transform_3(%arg0: i32) -> (i32, i32) {
    %c0_i32 = arith.constant 0 : i32
    %c0_i32_0 = arith.constant 0 : i32
    %c0_i32_1 = arith.constant 0 : i32
    return %c0_i32, %c0_i32_0 : i32, i32
  }
  func.func @transform_4(%arg0: i32) -> (i32, i32) {
    %c0_i32 = arith.constant 0 : i32
    %c0_i32_0 = arith.constant 0 : i32
    %c0_i32_1 = arith.constant 0 : i32
    return %c0_i32, %c0_i32_0 : i32, i32
  }
  func.func @transform_5(%arg0: i32) -> (i32, i32) {
    %c0_i32 = arith.constant 0 : i32
    %c0_i32_0 = arith.constant 0 : i32
    %c0_i32_1 = arith.constant 0 : i32
    return %c0_i32, %c0_i32_0 : i32, i32
  }
  func.func @transform_6(%arg0: i32) -> (i32, i32) {
    %c0_i32 = arith.constant 0 : i32
    %c0_i32_0 = arith.constant 0 : i32
    %c0_i32_1 = arith.constant 0 : i32
    return %c0_i32, %c0_i32_0 : i32, i32
  }
}

</mosaic_0001>

<llo_original>
// kernel: tpu_custom_call.1
$region0: #{tpu_custom_call.1}
  #allocation0 [shape = 'u32[]', space=smem, size = 0x4, offset = 0x4, fixed_abs, tag = 'smem constant byte address 0x4 - core index']
  #allocation1 [shape = 'u32[144,128]{1,0:T(1,128)}', space=vmem, size = 0x12000, scoped, tag = 'internal scratch']
  %s0 = inlined_call_operand.vmem [shape: f32[16,128], index: 0, kind: input, shape index: {}]
  %s1 = inlined_call_operand.vmem [shape: f32[1,16,128], index: 1, kind: input, shape index: {}]
  %s2 = inlined_call_operand.vmem [shape: f32[1,16,128], index: 2, kind: input, shape index: {}]
  %s3 = inlined_call_operand.hbm [shape: f32[128,256], index: 3, kind: input, shape index: {}]
  %s4 = inlined_call_operand.hbm [shape: f32[256,256], index: 4, kind: input, shape index: {}]
  %s5 = inlined_call_operand.vmem [shape: f32[64,16], index: 5, kind: input, shape index: {}]
  %s6 = inlined_call_operand.hbm [shape: f32[16,128], index: 6, kind: output, shape index: {}]
  %s7 = sld [smem:[#allocation0]]
  $region42: #{tpu_custom_call.1} parent=0
    _
  %s9 = ssub.s32 1, %s7
  %s10 = scalar_select 0, %s9, %s7
  $region1: #{tpu_custom_call.1} parent=0
    #allocation2 [shape = 'u8[131072]{0}', space=vmem, size = 0x20000, scoped, tag = 'input window, operand 3, single buffered']
    #allocation3 [shape = 's32[1]{0}', space=sflag, size = 0x4, scoped, tag = 'scoped memory for tpu_custom_call.1']
    #allocation4 [shape = 's32[1]{0}', space=sflag, size = 0x4, scoped, tag = 'scoped memory for tpu_custom_call.1']
    #allocation5 [shape = 'u8[262144]{0}', space=vmem, size = 0x40000, scoped, tag = 'input window, operand 4, single buffered']
    #allocation6 [shape = 's32[1]{0}', space=sflag, size = 0x4, scoped, tag = 'scoped memory for tpu_custom_call.1']
    #allocation7 [shape = 'u8[8192]{0}', space=vmem, size = 0x2000, scoped, tag = 'output window, operand 0, single buffered']
    %11 = vsyncpa [#allocation3], 0
    %12 = vsyncpa [#allocation6], 0
    %13 = vsyncpa [#allocation4], 0
    // Predicated region
    $region2: #{tpu_custom_call.1} parent=1 // pred_check
      _
    $region3: #{tpu_custom_call.1} parent=1 // pred_check_branch
      %15 = sbr.rel (0) target = $region5
    $region4: #{tpu_custom_call.1} parent=1 // pred_region
      _
    $region5: #{tpu_custom_call.1} parent=1 // pred_fallthru
      _
    // Predicated region
    $region6: #{tpu_custom_call.1} parent=1 // pred_check
      _
    $region7: #{tpu_custom_call.1} parent=1 // pred_check_branch
      %17 = sbr.rel (0) target = $region9
    $region8: #{tpu_custom_call.1} parent=1 // pred_region
      _
    $region9: #{tpu_custom_call.1} parent=1 // pred_fallthru
      _
    // Predicated region
    $region10: #{tpu_custom_call.1} parent=1 // pred_check
      _
    $region11: #{tpu_custom_call.1} parent=1 // pred_check_branch
      %19 = sbr.rel (0) target = $region13
    $region12: #{tpu_custom_call.1} parent=1 // pred_region
      _
    $region13: #{tpu_custom_call.1} parent=1 // pred_fallthru
      _
    // Predicated region
    $region14: #{tpu_custom_call.1} parent=1 // pred_check
      _
    $region15: #{tpu_custom_call.1} parent=1 // pred_check_branch
      %21 = sbr.rel (0) target = $region17
    $region16: #{tpu_custom_call.1} parent=1 // pred_region
      %s23 = ssub.s32 4096, 4096
      %24 = vsyncadd [#allocation3], %s23
      %s25 = sshll.u32 [#allocation2], 4
      %s26 = int_to_ptr.vmem [resolvable:$true] %s25
      %31 = dma.hbm_to_vmem [thread:$0]  %s3, 4096, %s26, [#allocation3], 256, 256, 16
    $region17: #{tpu_custom_call.1} parent=1 // pred_fallthru
      _
    // Predicated region
    $region18: #{tpu_custom_call.1} parent=1 // pred_check
      _
    $region19: #{tpu_custom_call.1} parent=1 // pred_check_branch
      %33 = sbr.rel (0) target = $region21
    $region20: #{tpu_custom_call.1} parent=1 // pred_region
      %s35 = ssub.s32 8192, 8192
      %36 = vsyncadd [#allocation6], %s35
      %s37 = sshll.u32 [#allocation5], 4
      %s38 = int_to_ptr.vmem [resolvable:$true] %s37
      %43 = dma.hbm_to_vmem [thread:$0]  %s4, 8192, %s38, [#allocation6], 256, 256, 16
    $region21: #{tpu_custom_call.1} parent=1 // pred_fallthru
      _
    // Predicated region
    $region22: #{tpu_custom_call.1} parent=1 // pred_check
      _
    $region23: #{tpu_custom_call.1} parent=1 // pred_check_branch
      %45 = sbr.rel (0) target = $region25
    $region24: #{tpu_custom_call.1} parent=1 // pred_region
      _
    $region25: #{tpu_custom_call.1} parent=1 // pred_fallthru
      _
    // Predicated region
    $region26: #{tpu_custom_call.1} parent=1 // pred_check
      _
    $region27: #{tpu_custom_call.1} parent=1 // pred_check_branch
      %47 = sbr.rel (0) target = $region29
    $region28: #{tpu_custom_call.1} parent=1 // pred_region
      %48 = dma.done [#allocation3], 4096
    $region29: #{tpu_custom_call.1} parent=1 // pred_fallthru
      _
    // Predicated region
    $region30: #{tpu_custom_call.1} parent=1 // pred_check
      _
    $region31: #{tpu_custom_call.1} parent=1 // pred_check_branch
      %50 = sbr.rel (0) target = $region33
    $region32: #{tpu_custom_call.1} parent=1 // pred_region
      %51 = dma.done [#allocation6], 8192
    $region33: #{tpu_custom_call.1} parent=1 // pred_fallthru
      _
    %v52 = vld [vmem:[%s5] sm:$0xff]
    %v53 = vld [vmem:[%s5 + $0x8] sm:$0xff]
    %v54 = vld [vmem:[%s5 + $0x10] sm:$0xff]
    %v55 = vld [vmem:[%s5 + $0x18] sm:$0xff]
    %v56 = vld [vmem:[%s5 + $0x20] sm:$0xff]
    %v57 = vld [vmem:[%s5 + $0x28] sm:$0xff]
    %v58 = vld [vmem:[%s5 + $0x30] sm:$0xff]
    %v59 = vld [vmem:[%s5 + $0x38] sm:$0xff]
    %v60 = vld [vmem:[#allocation2] sm:$0xff]
    %v61 = vld [vmem:[#allocation2 + $0x8] sm:$0xff]
    %v62 = vld [vmem:[#allocation2 + $0x10] sm:$0xff]
    %v63 = vld [vmem:[#allocation2 + $0x18] sm:$0xff]
    %v64 = vld [vmem:[#allocation2 + $0x20] sm:$0xff]
    %v65 = vld [vmem:[#allocation2 + $0x28] sm:$0xff]
    %v66 = vld [vmem:[#allocation2 + $0x30] sm:$0xff]
    %v67 = vld [vmem:[#allocation2 + $0x38] sm:$0xff]
    %v68 = vld [vmem:[#allocation2 + $0x40] sm:$0xff]
    %v69 = vld [vmem:[#allocation2 + $0x48] sm:$0xff]
    %v70 = vld [vmem:[#allocation2 + $0x50] sm:$0xff]
    %v71 = vld [vmem:[#allocation2 + $0x58] sm:$0xff]
    %v72 = vld [vmem:[#allocation2 + $0x60] sm:$0xff]
    %v73 = vld [vmem:[#allocation2 + $0x68] sm:$0xff]
    %v74 = vld [vmem:[#allocation2 + $0x70] sm:$0xff]
    %v75 = vld [vmem:[#allocation2 + $0x78] sm:$0xff]
    %v76 = vld [vmem:[#allocation2 + $0x80] sm:$0xff]
    %v77 = vld [vmem:[#allocation2 + $0x88] sm:$0xff]
    %v78 = vld [vmem:[#allocation2 + $0x90] sm:$0xff]
    %v79 = vld [vmem:[#allocation2 + $0x98] sm:$0xff]
    %v80 = vld [vmem:[#allocation2 + $0xa0] sm:$0xff]
    %v81 = vld [vmem:[#allocation2 + $0xa8] sm:$0xff]
    %v82 = vld [vmem:[#allocation2 + $0xb0] sm:$0xff]
    %v83 = vld [vmem:[#allocation2 + $0xb8] sm:$0xff]
    %v84 = vld [vmem:[#allocation2 + $0xc0] sm:$0xff]
    %v85 = vld [vmem:[#allocation2 + $0xc8] sm:$0xff]
    %v86 = vld [vmem:[#allocation2 + $0xd0] sm:$0xff]
    %v87 = vld [vmem:[#allocation2 + $0xd8] sm:$0xff]
    %v88 = vld [vmem:[#allocation2 + $0xe0] sm:$0xff]
    %v89 = vld [vmem:[#allocation2 + $0xe8] sm:$0xff]
    %v90 = vld [vmem:[#allocation2 + $0xf0] sm:$0xff]
    %v91 = vld [vmem:[#allocation2 + $0xf8] sm:$0xff]
    %v92 = vld [vmem:[#allocation5] sm:$0xff]
    %v93 = vld [vmem:[#allocation5 + $0x8] sm:$0xff]
    %v94 = vld [vmem:[#allocation5 + $0x10] sm:$0xff]
    %v95 = vld [vmem:[#allocation5 + $0x18] sm:$0xff]
    %v96 = vld [vmem:[#allocation5 + $0x20] sm:$0xff]
    %v97 = vld [vmem:[#allocation5 + $0x28] sm:$0xff]
    %v98 = vld [vmem:[#allocation5 + $0x30] sm:$0xff]
    %v99 = vld [vmem:[#allocation5 + $0x38] sm:$0xff]
    %v100 = vld [vmem:[#allocation5 + $0x40] sm:$0xff]
    %v101 = vld [vmem:[#allocation5 + $0x48] sm:$0xff]
    %v102 = vld [vmem:[#allocation5 + $0x50] sm:$0xff]
    %v103 = vld [vmem:[#allocation5 + $0x58] sm:$0xff]
    %v104 = vld [vmem:[#allocation5 + $0x60] sm:$0xff]
    %v105 = vld [vmem:[#allocation5 + $0x68] sm:$0xff]
    %v106 = vld [vmem:[#allocation5 + $0x70] sm:$0xff]
    %v107 = vld [vmem:[#allocation5 + $0x78] sm:$0xff]
    %v108 = vld [vmem:[#allocation5 + $0x80] sm:$0xff]
    %v109 = vld [vmem:[#allocation5 + $0x88] sm:$0xff]
    %v110 = vld [vmem:[#allocation5 + $0x90] sm:$0xff]
    %v111 = vld [vmem:[#allocation5 + $0x98] sm:$0xff]
    %v112 = vld [vmem:[#allocation5 + $0xa0] sm:$0xff]
    %v113 = vld [vmem:[#allocation5 + $0xa8] sm:$0xff]
    %v114 = vld [vmem:[#allocation5 + $0xb0] sm:$0xff]
    %v115 = vld [vmem:[#allocation5 + $0xb8] sm:$0xff]
    %v116 = vld [vmem:[#allocation5 + $0xc0] sm:$0xff]
    %v117 = vld [vmem:[#allocation5 + $0xc8] sm:$0xff]
    %v118 = vld [vmem:[#allocation5 + $0xd0] sm:$0xff]
    %v119 = vld [vmem:[#allocation5 + $0xd8] sm:$0xff]
    %v120 = vld [vmem:[#allocation5 + $0xe0] sm:$0xff]
    %v121 = vld [vmem:[#allocation5 + $0xe8] sm:$0xff]
    %v122 = vld [vmem:[#allocation5 + $0xf0] sm:$0xff]
    %v123 = vld [vmem:[#allocation5 + $0xf8] sm:$0xff]
    %v124 = vld [vmem:[#allocation5 + $0x100] sm:$0xff]
    %v125 = vld [vmem:[#allocation5 + $0x108] sm:$0xff]
    %v126 = vld [vmem:[#allocation5 + $0x110] sm:$0xff]
    %v127 = vld [vmem:[#allocation5 + $0x118] sm:$0xff]
    %v128 = vld [vmem:[#allocation5 + $0x120] sm:$0xff]
    %v129 = vld [vmem:[#allocation5 + $0x128] sm:$0xff]
    %v130 = vld [vmem:[#allocation5 + $0x130] sm:$0xff]
    %v131 = vld [vmem:[#allocation5 + $0x138] sm:$0xff]
    %v132 = vld [vmem:[#allocation5 + $0x140] sm:$0xff]
    %v133 = vld [vmem:[#allocation5 + $0x148] sm:$0xff]
    %v134 = vld [vmem:[#allocation5 + $0x150] sm:$0xff]
    %v135 = vld [vmem:[#allocation5 + $0x158] sm:$0xff]
    %v136 = vld [vmem:[#allocation5 + $0x160] sm:$0xff]
    %v137 = vld [vmem:[#allocation5 + $0x168] sm:$0xff]
    %v138 = vld [vmem:[#allocation5 + $0x170] sm:$0xff]
    %v139 = vld [vmem:[#allocation5 + $0x178] sm:$0xff]
    %v140 = vld [vmem:[#allocation5 + $0x180] sm:$0xff]
    %v141 = vld [vmem:[#allocation5 + $0x188] sm:$0xff]
    %v142 = vld [vmem:[#allocation5 + $0x190] sm:$0xff]
    %v143 = vld [vmem:[#allocation5 + $0x198] sm:$0xff]
    %v144 = vld [vmem:[#allocation5 + $0x1a0] sm:$0xff]
    %v145 = vld [vmem:[#allocation5 + $0x1a8] sm:$0xff]
    %v146 = vld [vmem:[#allocation5 + $0x1b0] sm:$0xff]
    %v147 = vld [vmem:[#allocation5 + $0x1b8] sm:$0xff]
    %v148 = vld [vmem:[#allocation5 + $0x1c0] sm:$0xff]
    %v149 = vld [vmem:[#allocation5 + $0x1c8] sm:$0xff]
    %v150 = vld [vmem:[#allocation5 + $0x1d0] sm:$0xff]
    %v151 = vld [vmem:[#allocation5 + $0x1d8] sm:$0xff]
    %v152 = vld [vmem:[#allocation5 + $0x1e0] sm:$0xff]
    %v153 = vld [vmem:[#allocation5 + $0x1e8] sm:$0xff]
    %v154 = vld [vmem:[#allocation5 + $0x1f0] sm:$0xff]
    %v155 = vld [vmem:[#allocation5 + $0x1f8] sm:$0xff]
    %v156 = vld [vmem:[%s0] sm:$0xff]
    %v157 = vld [vmem:[%s0 + $0x8] sm:$0xff]
    %v158 = vld [vmem:[%s1] sm:$0xff]
    %v159 = vld [vmem:[%s1 + $0x8] sm:$0xff]
    %v160 = vld [vmem:[%s2] sm:$0xff]
    %v161 = vld [vmem:[%s2 + $0x8] sm:$0xff]
    %162 = vmatprep.subr.mxu0 %v91
    %163 = vmatpush1.msra.mxu0 %v90
    %164 = vmatprep.subr.mxu0 %v89
    %165 = vmatpush1.msra.mxu0 %v88
    %166 = vmatprep.subr.mxu0 %v87
    %167 = vmatpush1.msra.mxu0 %v86
    %168 = vmatprep.subr.mxu0 %v85
    %169 = vmatpush1.msra.mxu0 %v84
    %170 = vmatprep.subr.mxu0 %v83
    %171 = vmatpush1.msra.mxu0 %v82
    %172 = vmatprep.subr.mxu0 %v81
    %173 = vmatpush1.msra.mxu0 %v80
    %174 = vmatprep.subr.mxu0 %v79
    %175 = vmatpush1.msra.mxu0 %v78
    %176 = vmatprep.subr.mxu0 %v77
    %177 = vmatpush1.msra.mxu0 %v76
    %178 = vmatprep.subr.mxu0 %v75
    %179 = vmatpush1.msra.mxu0 %v74
    %180 = vmatprep.subr.mxu0 %v73
    %181 = vmatpush1.msra.mxu0 %v72
    %182 = vmatprep.subr.mxu0 %v71
    %183 = vmatpush1.msra.mxu0 %v70
    %184 = vmatprep.subr.mxu0 %v69
    %185 = vmatpush1.msra.mxu0 %v68
    %186 = vmatprep.subr.mxu0 %v67
    %187 = vmatpush1.msra.mxu0 %v66
    %188 = vmatprep.subr.mxu0 %v65
    %189 = vmatpush1.msra.mxu0 %v64
    %190 = vmatprep.subr.mxu0 %v63
    %191 = vmatpush1.msra.mxu0 %v62
    %192 = vmatprep.subr.mxu0 %v61
    %193 = vmatpush1.msra.mxu0 %v60
    %194 = vmatprep.subr.mxu0 0.0
    %195 = vmatpush2.msra.mxu0 0.0
    %196 = vmatprep.subr.mxu0 0.0
    %197 = vmatpush2.msra.mxu0 0.0
    %198 = vmatprep.subr.mxu0 0.0
    %199 = vmatpush2.msra.mxu0 0.0
    %200 = vmatprep.subr.mxu0 0.0
    %201 = vmatpush2.msra.mxu0 0.0
    %202 = vmatprep.subr.mxu0 0.0
    %203 = vmatpush2.msra.mxu0 0.0
    %204 = vmatprep.subr.mxu0 0.0
    %205 = vmatpush2.msra.mxu0 0.0
    %206 = vmatprep.subr.mxu0 0.0
    %207 = vmatpush2.msra.mxu0 0.0
    %208 = vmatprep.subr.mxu0 0.0
    %209 = vmatpush2.msra.mxu0 0.0
    %210 = vmatprep.subr.mxu0 0.0
    %211 = vmatpush2.msra.mxu0 0.0
    %212 = vmatprep.subr.mxu0 0.0
    %213 = vmatpush2.msra.mxu0 0.0
    %214 = vmatprep.subr.mxu0 0.0
    %215 = vmatpush2.msra.mxu0 0.0
    %216 = vmatprep.subr.mxu0 0.0
    %217 = vmatpush2.msra.mxu0 0.0
    %218 = vmatprep.subr.mxu0 0.0
    %219 = vmatpush2.msra.mxu0 0.0
    %220 = vmatprep.subr.mxu0 0.0
    %221 = vmatpush2.msra.mxu0 0.0
    %222 = vmatprep.subr.mxu0 0.0
    %223 = vmatpush2.msra.mxu0 0.0
    %224 = vmatprep.subr.mxu0 0.0
    %225 = vmatpush2.msra.mxu0 0.0
    %226 = vmatprep.mubr.f32.mxu0 0.0
    %227 = vmatmul.mubr.f32.gmra.mxu0 %v156
    %v228 = vpop.f32.mrf.mxu0
    %v229 = vadd.f32 0.0, %v228
    %v230 = vpop.f32.mrf.mxu0
    %v231 = vadd.f32 0.0, %v230
    %232 = vmatprep.mubr.f32.mxu0 0.0
    %233 = vmatmul.mubr.f32.gmra.mxu0 %v157
    %v234 = vpop.f32.mrf.mxu0
    %v235 = vadd.f32 0.0, %v234
    %v236 = vpop.f32.mrf.mxu0
    %v237 = vadd.f32 0.0, %v236
    %238 = vdwg.mxu0
    %vm239 = vcmask 130048
    %v241 = vsel %vm239, %v52, 0
    %v244 = vsel %vm239, %v53, 0
    %v247 = vsel %vm239, %v54, 0
    %v250 = vsel %vm239, %v55, 0
    %252 = vmatprep.subr.mxu0 0.0
    %253 = vmatpush1.msra.mxu0 0.0
    %254 = vmatprep.subr.mxu0 0.0
    %255 = vmatpush1.msra.mxu0 0.0
    %256 = vmatprep.subr.mxu0 0.0
    %257 = vmatpush1.msra.mxu0 0.0
    %258 = vmatprep.subr.mxu0 0.0
    %259 = vmatpush1.msra.mxu0 0.0
    %260 = vmatprep.subr.mxu0 0.0
    %261 = vmatpush1.msra.mxu0 0.0
    %262 = vmatprep.subr.mxu0 0.0
    %263 = vmatpush1.msra.mxu0 0.0
    %264 = vmatprep.subr.mxu0 0.0
    %265 = vmatpush1.msra.mxu0 0.0
    %266 = vmatprep.subr.mxu0 0.0
    %267 = vmatpush1.msra.mxu0 0.0
    %268 = vmatprep.subr.mxu0 0.0
    %269 = vmatpush1.msra.mxu0 0.0
    %270 = vmatprep.subr.mxu0 0.0
    %271 = vmatpush1.msra.mxu0 0.0
    %272 = vmatprep.subr.mxu0 0.0
    %273 = vmatpush1.msra.mxu0 0.0
    %274 = vmatprep.subr.mxu0 0.0
    %275 = vmatpush1.msra.mxu0 0.0
    %276 = vmatprep.subr.mxu0 0.0
    %277 = vmatpush1.msra.mxu0 0.0
    %278 = vmatprep.subr.mxu0 0.0
    %279 = vmatpush1.msra.mxu0 0.0
    %280 = vmatprep.subr.mxu0 %v237
    %281 = vmatpush1.msra.mxu0 %v235
    %282 = vmatprep.subr.mxu0 %v231
    %283 = vmatpush1.msra.mxu0 %v229
    %284 = vmatprep.subr.mxu0 0.0
    %285 = vmatpush2.msra.mxu0 0.0
    %286 = vmatprep.subr.mxu0 0.0
    %287 = vmatpush2.msra.mxu0 0.0
    %288 = vmatprep.subr.mxu0 0.0
    %289 = vmatpush2.msra.mxu0 0.0
    %290 = vmatprep.subr.mxu0 0.0
    %291 = vmatpush2.msra.mxu0 0.0
    %292 = vmatprep.subr.mxu0 0.0
    %293 = vmatpush2.msra.mxu0 0.0
    %294 = vmatprep.subr.mxu0 0.0
    %295 = vmatpush2.msra.mxu0 0.0
    %296 = vmatprep.subr.mxu0 0.0
    %297 = vmatpush2.msra.mxu0 0.0
    %298 = vmatprep.subr.mxu0 0.0
    %299 = vmatpush2.msra.mxu0 0.0
    %300 = vmatprep.subr.mxu0 0.0
    %301 = vmatpush2.msra.mxu0 0.0
    %302 = vmatprep.subr.mxu0 0.0
    %303 = vmatpush2.msra.mxu0 0.0
    %304 = vmatprep.subr.mxu0 0.0
    %305 = vmatpush2.msra.mxu0 0.0
    %306 = vmatprep.subr.mxu0 0.0
    %307 = vmatpush2.msra.mxu0 0.0
    %308 = vmatprep.subr.mxu0 0.0
    %309 = vmatpush2.msra.mxu0 0.0
    %310 = vmatprep.subr.mxu0 0.0
    %311 = vmatpush2.msra.mxu0 0.0
    %312 = vmatprep.subr.mxu0 0.0
    %313 = vmatpush2.msra.mxu0 0.0
    %314 = vmatprep.subr.mxu0 0.0
    %315 = vmatpush2.msra.mxu0 0.0
    %316 = vmatprep.mubr.f32.mxu0 0.0
    %317 = vmatmul.mubr.f32.gmra.mxu0 %v241
    %v318 = vpop.f32.mrf.mxu0
    %v319 = vadd.f32 0.0, %v318
    %v320 = vpop.f32.mrf.mxu0
    %v321 = vadd.f32 0.0, %v320
    %322 = vmatprep.mubr.f32.mxu0 0.0
    %323 = vmatmul.mubr.f32.gmra.mxu0 %v244
    %v324 = vpop.f32.mrf.mxu0
    %v325 = vadd.f32 0.0, %v324
    %v326 = vpop.f32.mrf.mxu0
    %v327 = vadd.f32 0.0, %v326
    %328 = vmatprep.mubr.f32.mxu0 0.0
    %329 = vmatmul.mubr.f32.gmra.mxu0 %v247
    %v330 = vpop.f32.mrf.mxu0
    %v331 = vadd.f32 0.0, %v330
    %v332 = vpop.f32.mrf.mxu0
    %v333 = vadd.f32 0.0, %v332
    %334 = vmatprep.mubr.f32.mxu0 0.0
    %335 = vmatmul.mubr.f32.gmra.mxu0 %v250
    %v336 = vpop.f32.mrf.mxu0
    %v337 = vadd.f32 0.0, %v336
    %v338 = vpop.f32.mrf.mxu0
    %v339 = vadd.f32 0.0, %v338
    %340 = vdwg.mxu0
    %v341 = vsub.f32 %v319, %v333
    %v342 = vsub.f32 %v325, %v339
    %v343 = vadd.f32 %v331, %v321
    %v344 = vadd.f32 %v337, %v327
    %v345 = vmul.f32 %v341, %v158
    %v346 = vmul.f32 %v342, %v159
    %v347 = vmul.f32 %v343, %v160
    %v348 = vmul.f32 %v344, %v161
    %v349 = vadd.f32 %v345, %v347
    %v350 = vadd.f32 %v346, %v348
    %v351 = vmul.f32 %v343, %v158
    %v352 = vmul.f32 %v344, %v159
    %v353 = vmul.f32 %v341, %v160
    %v354 = vmul.f32 %v342, %v161
    %v355 = vsub.f32 %v351, %v353
    %v356 = vsub.f32 %v352, %v354
    %357 = vmatprep.subr.mxu0 %v123
    %358 = vmatpush1.msra.mxu0 %v122
    %359 = vmatprep.subr.mxu0 %v121
    %360 = vmatpush1.msra.mxu0 %v120
    %361 = vmatprep.subr.mxu0 %v119
    %362 = vmatpush1.msra.mxu0 %v118
    %363 = vmatprep.subr.mxu0 %v117
    %364 = vmatpush1.msra.mxu0 %v116
    %365 = vmatprep.subr.mxu0 %v115
    %366 = vmatpush1.msra.mxu0 %v114
    %367 = vmatprep.subr.mxu0 %v113
    %368 = vmatpush1.msra.mxu0 %v112
    %369 = vmatprep.subr.mxu0 %v111
    %370 = vmatpush1.msra.mxu0 %v110
    %371 = vmatprep.subr.mxu0 %v109
    %372 = vmatpush1.msra.mxu0 %v108
    %373 = vmatprep.subr.mxu0 %v107
    %374 = vmatpush1.msra.mxu0 %v106
    %375 = vmatprep.subr.mxu0 %v105
    %376 = vmatpush1.msra.mxu0 %v104
    %377 = vmatprep.subr.mxu0 %v103
    %378 = vmatpush1.msra.mxu0 %v102
    %379 = vmatprep.subr.mxu0 %v101
    %380 = vmatpush1.msra.mxu0 %v100
    %381 = vmatprep.subr.mxu0 %v99
    %382 = vmatpush1.msra.mxu0 %v98
    %383 = vmatprep.subr.mxu0 %v97
    %384 = vmatpush1.msra.mxu0 %v96
    %385 = vmatprep.subr.mxu0 %v95
    %386 = vmatpush1.msra.mxu0 %v94
    %387 = vmatprep.subr.mxu0 %v93
    %388 = vmatpush1.msra.mxu0 %v92
    %389 = vmatprep.subr.mxu0 %v155
    %390 = vmatpush2.msra.mxu0 %v154
    %391 = vmatprep.subr.mxu0 %v153
    %392 = vmatpush2.msra.mxu0 %v152
    %393 = vmatprep.subr.mxu0 %v151
    %394 = vmatpush2.msra.mxu0 %v150
    %395 = vmatprep.subr.mxu0 %v149
    %396 = vmatpush2.msra.mxu0 %v148
    %397 = vmatprep.subr.mxu0 %v147
    %398 = vmatpush2.msra.mxu0 %v146
    %399 = vmatprep.subr.mxu0 %v145
    %400 = vmatpush2.msra.mxu0 %v144
    %401 = vmatprep.subr.mxu0 %v143
    %402 = vmatpush2.msra.mxu0 %v142
    %403 = vmatprep.subr.mxu0 %v141
    %404 = vmatpush2.msra.mxu0 %v140
    %405 = vmatprep.subr.mxu0 %v139
    %406 = vmatpush2.msra.mxu0 %v138
    %407 = vmatprep.subr.mxu0 %v137
    %408 = vmatpush2.msra.mxu0 %v136
    %409 = vmatprep.subr.mxu0 %v135
    %410 = vmatpush2.msra.mxu0 %v134
    %411 = vmatprep.subr.mxu0 %v133
    %412 = vmatpush2.msra.mxu0 %v132
    %413 = vmatprep.subr.mxu0 %v131
    %414 = vmatpush2.msra.mxu0 %v130
    %415 = vmatprep.subr.mxu0 %v129
    %416 = vmatpush2.msra.mxu0 %v128
    %417 = vmatprep.subr.mxu0 %v127
    %418 = vmatpush2.msra.mxu0 %v126
    %419 = vmatprep.subr.mxu0 %v125
    %420 = vmatpush2.msra.mxu0 %v124
    %421 = vmatprep.mubr.f32.mxu0 %v355
    %422 = vmatmul.mubr.f32.gmra.mxu0 %v349
    %v423 = vpop.f32.mrf.mxu0
    %v424 = vadd.f32 0.0, %v423
    %v425 = vpop.f32.mrf.mxu0
    %v426 = vadd.f32 0.0, %v425
    %427 = vmatprep.mubr.f32.mxu0 %v356
    %428 = vmatmul.mubr.f32.gmra.mxu0 %v350
    %v429 = vpop.f32.mrf.mxu0
    %v430 = vadd.f32 0.0, %v429
    %v431 = vpop.f32.mrf.mxu0
    %v432 = vadd.f32 0.0, %v431
    %433 = vdwg.mxu0
    %v435 = vsel %vm239, %v56, 0
    %v438 = vsel %vm239, %v57, 0
    %v441 = vsel %vm239, %v58, 0
    %v444 = vsel %vm239, %v59, 0
    %446 = vmatprep.subr.mxu0 0.0
    %447 = vmatpush1.msra.mxu0 0.0
    %448 = vmatprep.subr.mxu0 0.0
    %449 = vmatpush1.msra.mxu0 0.0
    %450 = vmatprep.subr.mxu0 0.0
    %451 = vmatpush1.msra.mxu0 0.0
    %452 = vmatprep.subr.mxu0 0.0
    %453 = vmatpush1.msra.mxu0 0.0
    %454 = vmatprep.subr.mxu0 0.0
    %455 = vmatpush1.msra.mxu0 0.0
    %456 = vmatprep.subr.mxu0 0.0
    %457 = vmatpush1.msra.mxu0 0.0
    %458 = vmatprep.subr.mxu0 0.0
    %459 = vmatpush1.msra.mxu0 0.0
    %460 = vmatprep.subr.mxu0 0.0
    %461 = vmatpush1.msra.mxu0 0.0
    %462 = vmatprep.subr.mxu0 0.0
    %463 = vmatpush1.msra.mxu0 0.0
    %464 = vmatprep.subr.mxu0 0.0
    %465 = vmatpush1.msra.mxu0 0.0
    %466 = vmatprep.subr.mxu0 0.0
    %467 = vmatpush1.msra.mxu0 0.0
    %468 = vmatprep.subr.mxu0 0.0
    %469 = vmatpush1.msra.mxu0 0.0
    %470 = vmatprep.subr.mxu0 0.0
    %471 = vmatpush1.msra.mxu0 0.0
    %472 = vmatprep.subr.mxu0 0.0
    %473 = vmatpush1.msra.mxu0 0.0
    %474 = vmatprep.subr.mxu0 %v432
    %475 = vmatpush1.msra.mxu0 %v430
    %476 = vmatprep.subr.mxu0 %v426
    %477 = vmatpush1.msra.mxu0 %v424
    %478 = vmatprep.subr.mxu0 0.0
    %479 = vmatpush2.msra.mxu0 0.0
    %480 = vmatprep.subr.mxu0 0.0
    %481 = vmatpush2.msra.mxu0 0.0
    %482 = vmatprep.subr.mxu0 0.0
    %483 = vmatpush2.msra.mxu0 0.0
    %484 = vmatprep.subr.mxu0 0.0
    %485 = vmatpush2.msra.mxu0 0.0
    %486 = vmatprep.subr.mxu0 0.0
    %487 = vmatpush2.msra.mxu0 0.0
    %488 = vmatprep.subr.mxu0 0.0
    %489 = vmatpush2.msra.mxu0 0.0
    %490 = vmatprep.subr.mxu0 0.0
    %491 = vmatpush2.msra.mxu0 0.0
    %492 = vmatprep.subr.mxu0 0.0
    %493 = vmatpush2.msra.mxu0 0.0
    %494 = vmatprep.subr.mxu0 0.0
    %495 = vmatpush2.msra.mxu0 0.0
    %496 = vmatprep.subr.mxu0 0.0
    %497 = vmatpush2.msra.mxu0 0.0
    %498 = vmatprep.subr.mxu0 0.0
    %499 = vmatpush2.msra.mxu0 0.0
    %500 = vmatprep.subr.mxu0 0.0
    %501 = vmatpush2.msra.mxu0 0.0
    %502 = vmatprep.subr.mxu0 0.0
    %503 = vmatpush2.msra.mxu0 0.0
    %504 = vmatprep.subr.mxu0 0.0
    %505 = vmatpush2.msra.mxu0 0.0
    %506 = vmatprep.subr.mxu0 0.0
    %507 = vmatpush2.msra.mxu0 0.0
    %508 = vmatprep.subr.mxu0 0.0
    %509 = vmatpush2.msra.mxu0 0.0
    %510 = vmatprep.mubr.f32.mxu0 0.0
    %511 = vmatmul.mubr.f32.gmra.mxu0 %v435
    %v512 = vpop.f32.mrf.mxu0
    %v513 = vadd.f32 0.0, %v512
    %v514 = vpop.f32.mrf.mxu0
    %515 = vmatprep.mubr.f32.mxu0 0.0
    %516 = vmatmul.mubr.f32.gmra.mxu0 %v438
    %v517 = vpop.f32.mrf.mxu0
    %v518 = vadd.f32 0.0, %v517
    %v519 = vpop.f32.mrf.mxu0
    %520 = vmatprep.mubr.f32.mxu0 0.0
    %521 = vmatmul.mubr.f32.gmra.mxu0 %v441
    %v522 = vpop.f32.mrf.mxu0
    %v523 = vpop.f32.mrf.mxu0
    %v524 = vadd.f32 0.0, %v523
    %525 = vmatprep.mubr.f32.mxu0 0.0
    %526 = vmatmul.mubr.f32.gmra.mxu0 %v444
    %v527 = vpop.f32.mrf.mxu0
    %v528 = vpop.f32.mrf.mxu0
    %v529 = vadd.f32 0.0, %v528
    %530 = vdwg.mxu0
    %v531 = vsub.f32 %v513, %v524
    %v532 = vsub.f32 %v518, %v529
    %533 = vst [vmem:[#allocation7] sm:$0xff] %v531
    %534 = vst [vmem:[#allocation7 + $0x8] sm:$0xff] %v532
    // Predicated region
    $region34: #{tpu_custom_call.1} parent=1 // pred_check
      _
    $region35: #{tpu_custom_call.1} parent=1 // pred_check_branch
      %536 = sbr.rel (0) target = $region37
    $region36: #{tpu_custom_call.1} parent=1 // pred_region
      %s538 = ssub.s32 256, 256
      %539 = vsyncadd [#allocation4], %s538
      %s540 = sshll.u32 [#allocation7], 4
      %s541 = int_to_ptr.vmem [resolvable:$true] %s540
      %546 = dma.vmem_to_hbm [thread:$0]  %s541, 256, %s6, [#allocation4], 128, 128, 8
    $region37: #{tpu_custom_call.1} parent=1 // pred_fallthru
      _
    // Predicated region
    $region38: #{tpu_custom_call.1} parent=1 // pred_check
      _
    $region39: #{tpu_custom_call.1} parent=1 // pred_check_branch
      %548 = sbr.rel (0) target = $region41
    $region40: #{tpu_custom_call.1} parent=1 // pred_region
      %549 = dma.done [#allocation4], 256
    $region41: #{tpu_custom_call.1} parent=1 // pred_fallthru
      _
    %550 = vsyncpa [#allocation3], 1
    %551 = vsyncpa [#allocation6], 1
    %552 = vsyncpa [#allocation4], 1

</llo_original>
